<compile_context>
chip_gen: v7x
topology: tpu7x:2x2x1
jax: 0.10.0
libtpu: 0.0.40
codegen_flags: <defaults>
</compile_context>

<pallas_src>
import functools

import jax
import jax.numpy as jnp
from jax.experimental import pallas as pl
from jax.experimental.pallas import tpu as pltpu

EPS = 1e-6
_DEFAULT_DROPOUT_P = 0.1
_MASK31 = 0x7FFFFFFF
_FALLBACK_VMEM_BYTES = 64 * 1024 * 1024   # v7x per-TC VMEM (most restrictive chip)


def _round_up(n, m):
    return ((n + m - 1) // m) * m


@functools.lru_cache(maxsize=1)
def _vmem_budget():
    """Return (tile_budget_bytes, vmem_limit_bytes) from the chip's real VMEM size."""
    cap = _FALLBACK_VMEM_BYTES
    try:
        cap_q = getattr(pltpu.get_tpu_info(), "vmem_capacity_bytes", None)
        if cap_q:
            cap = int(cap_q)
    except Exception:
        pass
    return int(cap * 0.70), int(cap * 0.85)


def _pick_tm(rows, feat, stream_itemsizes, extra_bytes=0, mxu_align=None):
    """Largest row tile whose double-buffered row streams fit the VMEM budget."""
    budget, _ = _vmem_budget()
    per_row = 2 * feat * int(sum(stream_itemsizes))   # x2 for double buffering
    usable = max(budget - extra_bytes, per_row * 8)
    tm = int(usable // per_row)
    tm = min(tm, 2048)
    if rows > 16:                  # keep >= 2 row tiles so both v7x TCs get work
        tm = min(tm, _round_up((rows + 1) // 2, 8))
    align = mxu_align if (mxu_align and tm >= mxu_align) else 8
    tm = max(8, (tm // align) * align)
    tm = min(tm, _round_up(rows, 8))
    return max(tm, 8)


# ------------------------------ math helpers ---------------------------------


def _keep_mask(shape, row_base, seed, dropout_p):
    """Deterministic Bernoulli(1-p) keep mask hashed from ABSOLUTE (row, col).

    Row and column are mixed separately on thin (tm,1) / (1,feat) slabs (nearly
    free on the VPU), so the full-tile work is one broadcast add plus one
    xorshift-multiply round.  Depends only on absolute position + seed, so the
    mask is identical for any tile size / grid layout, and there is no rows*feat
    product that could overflow int32.
    """
    tm, feat = shape
    rows = jax.lax.broadcasted_iota(jnp.int32, (tm, 1), 0) + row_base
    cols = jax.lax.broadcasted_iota(jnp.int32, (1, feat), 1)

    hr = (rows ^ seed) & _MASK31                                 # (tm, 1): ~free
    hr = (((hr >> 15) ^ hr) * 0x045D9F3B) & _MASK31
    hr = (((hr >> 13) ^ hr) * 0x5BD1E995) & _MASK31

    hc = (cols * 0x27D4EB2F) & _MASK31                           # (1, feat): ~free
    hc = (((hc >> 15) ^ hc) * 0x045D9F3B) & _MASK31
    hc = ((hc >> 13) ^ hc)

    h = (hr + hc) & _MASK31                                      # full tile: 1 add
    h = (((h >> 16) ^ h) * 0x045D9F3B) & _MASK31                 # 1 multiply round
    h = (h >> 16) ^ h                                            # uniform in [0, 2^31)

    threshold = min(int(round(dropout_p * 2147483648.0)), _MASK31)
    return h >= threshold


def _dropout_residual_layernorm(x, s, ln_w, ln_b, seed, row_base, dropout_p):
    """y = x + dropout(s);  out = w * (y - mean) / (std_unbiased + eps) + b."""
    feat = x.shape[-1]
    if dropout_p > 0.0:
        keep = _keep_mask(x.shape, row_base, seed, dropout_p)
        s = jnp.where(keep, s * (1.0 / (1.0 - dropout_p)), 0.0)
    y = x + s
    mean = jnp.mean(y, axis=-1, keepdims=True)
    d = y - mean
    var_unbiased = jnp.sum(d * d, axis=-1, keepdims=True) * (1.0 / (feat - 1))
    inv = 1.0 / (jnp.sqrt(var_unbiased) + EPS)                   # (tm, 1) column: cheap
    return ln_w * (d * inv) + ln_b


# -------------------------------- kernels ------------------------------------


def _sublayer_kernel(seed_ref, x_ref, sub_ref, lnw_ref, lnb_ref, o_ref, *, dropout_p):
    row_base = pl.program_id(0) * x_ref.shape[0]
    out = _dropout_residual_layernorm(
        x_ref[...].astype(jnp.float32),
        sub_ref[...].astype(jnp.float32),
        lnw_ref[...].astype(jnp.float32),
        lnb_ref[...].astype(jnp.float32),
        seed_ref[0], row_base, dropout_p)
    o_ref[...] = out.astype(o_ref.dtype)


def _sublayer_fused_kernel(seed_ref, x_ref, sw_ref, sb_ref, lnw_ref, lnb_ref, o_ref,
                           *, dropout_p):
    row_base = pl.program_id(0) * x_ref.shape[0]
    # Feed native-dtype operands (bf16 stays bf16) to the MXU; accumulate in f32.
    s = jnp.dot(x_ref[...], sw_ref[...], preferred_element_type=jnp.float32)
    s = s + sb_ref[...].astype(jnp.float32)
    out = _dropout_residual_layernorm(
        x_ref[...].astype(jnp.float32), s,
        lnw_ref[...].astype(jnp.float32),
        lnb_ref[...].astype(jnp.float32),
        seed_ref[0], row_base, dropout_p)
    o_ref[...] = out.astype(o_ref.dtype)


# ---------------------------- pallas_call wrappers ----------------------------


def _const_block(shape, single_buffer):
    """Constant-index block (weights / biases): its index_map never changes, so
    double-buffering only wastes VMEM — request a single buffer when supported."""
    idx = lambda i, seed_ref: (0, 0)
    if single_buffer:
        try:
            return pl.BlockSpec(shape, idx, pipeline_mode=pl.Buffered(1))
        except (TypeError, AttributeError):
            pass
    return pl.BlockSpec(shape, idx)


@functools.partial(jax.jit, static_argnames=("tm", "dropout_p", "vmem_limit"))
def _sublayer_conn_pallas(x2d, sub2d, lnw, lnb, seed, *, tm, dropout_p, vmem_limit):
    rows, feat = x2d.shape
    kernel = functools.partial(_sublayer_kernel, dropout_p=dropout_p)
    return pl.pallas_call(
        kernel,
        out_shape=jax.ShapeDtypeStruct((rows, feat), x2d.dtype),
        grid_spec=pltpu.PrefetchScalarGridSpec(
            num_scalar_prefetch=1,
            grid=(rows // tm,),
            in_specs=[
                pl.BlockSpec((tm, feat), lambda i, seed_ref: (i, 0)),   # x
                pl.BlockSpec((tm, feat), lambda i, seed_ref: (i, 0)),   # sublayer(x)
                pl.BlockSpec((1, feat), lambda i, seed_ref: (0, 0)),    # LN scale
                pl.BlockSpec((1, feat), lambda i, seed_ref: (0, 0)),    # LN bias
            ],
            out_specs=pl.BlockSpec((tm, feat), lambda i, seed_ref: (i, 0)),
        ),
        compiler_params=pltpu.CompilerParams(
            dimension_semantics=("parallel",),
            vmem_limit_bytes=vmem_limit,
        ),
    )(seed, x2d, sub2d, lnw, lnb)


@functools.partial(jax.jit, static_argnames=("tm", "dropout_p", "vmem_limit",
                                             "single_buffer_consts"))
def _sublayer_conn_fused_pallas(x2d, sub_w, sub_b, lnw, lnb, seed, *, tm, dropout_p,
                                vmem_limit, single_buffer_consts):
    rows, feat = x2d.shape
    kernel = functools.partial(_sublayer_fused_kernel, dropout_p=dropout_p)
    return pl.pallas_call(
        kernel,
        out_shape=jax.ShapeDtypeStruct((rows, feat), x2d.dtype),
        grid_spec=pltpu.PrefetchScalarGridSpec(
            num_scalar_prefetch=1,
            grid=(rows // tm,),
            in_specs=[
                pl.BlockSpec((tm, feat), lambda i, seed_ref: (i, 0)),       # x
                _const_block((feat, feat), single_buffer_consts),           # sublayer W
                _const_block((1, feat), single_buffer_consts),              # sublayer b
                _const_block((1, feat), single_buffer_consts),              # LN scale
                _const_block((1, feat), single_buffer_consts),              # LN bias
            ],
            out_specs=pl.BlockSpec((tm, feat), lambda i, seed_ref: (i, 0)),
        ),
        compiler_params=pltpu.CompilerParams(
            dimension_semantics=("parallel",),
            vmem_limit_bytes=vmem_limit,
        ),
    )(seed, x2d, sub_w, sub_b, lnw, lnb)


# -------------------------------- public API ----------------------------------


def _pad_rows(a, padded_rows):
    rows = a.shape[0]
    if padded_rows == rows:
        return a
    return jnp.pad(a, ((0, padded_rows - rows), (0, 0)))


def sublayer_connection(x, sublayer, ln_w, ln_b, *, dropout_p=_DEFAULT_DROPOUT_P,
                        seed=0, tm=None):
    """General path: arbitrary `sublayer` callable evaluated in plain JAX;
    dropout + residual + LayerNorm fused in one Pallas kernel (pure HBM streaming)."""
    feat = x.shape[-1]
    sub = sublayer(x)
    x2d = x.reshape(-1, feat)
    sub2d = sub.reshape(-1, feat)
    rows = x2d.shape[0]
    if tm is None:
        itemsizes = (jnp.dtype(x2d.dtype).itemsize, jnp.dtype(sub2d.dtype).itemsize,
                     jnp.dtype(x2d.dtype).itemsize)
        tm = _pick_tm(rows, feat, itemsizes)
    padded_rows = _round_up(rows, tm)
    _, vmem_limit = _vmem_budget()
    out2d = _sublayer_conn_pallas(
        _pad_rows(x2d, padded_rows), _pad_rows(sub2d, padded_rows),
        ln_w.reshape(1, feat), ln_b.reshape(1, feat),
        jnp.array([seed], dtype=jnp.int32),
        tm=tm, dropout_p=float(dropout_p), vmem_limit=vmem_limit)
    return out2d[:rows].reshape(x.shape)


def sublayer_connection_linear(x, sub_w, sub_b, ln_w, ln_b, *,
                               dropout_p=_DEFAULT_DROPOUT_P, seed=0, tm=None):
    """Fused path for sublayer(x) = x @ W + b: matmul (MXU) + dropout + residual +
    LayerNorm in a single kernel — no HBM round trip for sublayer(x)."""
    feat = x.shape[-1]
    x2d = x.reshape(-1, feat)
    rows = x2d.shape[0]
    if tm is None:
        w_bytes = feat * feat * jnp.dtype(sub_w.dtype).itemsize   # single-buffered W
        itemsizes = (jnp.dtype(x2d.dtype).itemsize, jnp.dtype(x2d.dtype).itemsize)
        tm = _pick_tm(rows, feat, itemsizes, extra_bytes=w_bytes + 16 * feat * 4,
                      mxu_align=256)
    padded_rows = _round_up(rows, tm)
    _, vmem_limit = _vmem_budget()
    args = (_pad_rows(x2d, padded_rows),
            sub_w.reshape(feat, feat), sub_b.reshape(1, feat),
            ln_w.reshape(1, feat), ln_b.reshape(1, feat),
            jnp.array([seed], dtype=jnp.int32))
    kwargs = dict(tm=tm, dropout_p=float(dropout_p), vmem_limit=vmem_limit)
    try:
        out2d = _sublayer_conn_fused_pallas(*args, single_buffer_consts=True, **kwargs)
    except Exception:
        # Fallback if this JAX/Mosaic build rejects pl.Buffered(1) pipeline_mode.
        out2d = _sublayer_conn_fused_pallas(*args, single_buffer_consts=False, **kwargs)
    return out2d[:rows].reshape(x.shape)


if __name__ == "__main__":
    batch, seq, hidden = 2, 8, 32

    key = jax.random.PRNGKey(0)
    kx, kw, kb = jax.random.split(key, 3)

    x = jax.random.normal(kx, (batch, seq, hidden), dtype=jnp.float32)

    # LayerNorm params (as in __init__: ones / zeros).
    ln_w = jnp.ones((hidden,), dtype=jnp.float32)
    ln_b = jnp.zeros((hidden,), dtype=jnp.float32)

    # Example sublayer: a deterministic linear projection hidden -> hidden.
    sub_w = jax.random.normal(kw, (hidden, hidden), dtype=jnp.float32) * 0.02
    sub_b = jax.random.normal(kb, (hidden,), dtype=jnp.float32) * 0.02
    sublayer = lambda t: jnp.dot(t, sub_w) + sub_b

    # ---- general path (arbitrary sublayer), multi-tile grid (tm=8 -> 2 tiles) ----
    out = sublayer_connection(x, sublayer, ln_w, ln_b, seed=0, tm=8)
    jax.block_until_ready(out)

    # Pure-JAX reference (same math + same deterministic hash-based dropout mask).
    x2d = x.reshape(-1, hidden)
    sub2d = sublayer(x).reshape(-1, hidden)
    ref = _dropout_residual_layernorm(
        x2d, sub2d, ln_w[None, :], ln_b[None, :],
        jnp.int32(0), 0, _DEFAULT_DROPOUT_P).reshape(x.shape)

    assert out.shape == (batch, seq, hidden)
    assert bool(jnp.all(jnp.isfinite(out)))
    assert jnp.allclose(out, ref, rtol=1e-4, atol=1e-4)

    # ---- fused linear-sublayer path (matmul on MXU inside the kernel) ----
    out_fused = sublayer_connection_linear(x, sub_w, sub_b, ln_w, ln_b, seed=0)
    jax.block_until_ready(out_fused)
    assert out_fused.shape == (batch, seq, hidden)
    assert bool(jnp.all(jnp.isfinite(out_fused)))
    assert jnp.allclose(out_fused, ref, rtol=1e-2, atol=1e-2)

    # ---- bf16 streaming smoke test: no forced f32 at the HBM boundary ----
    xb = x.astype(jnp.bfloat16)
    sub_bf16 = lambda t: (jnp.dot(t, sub_w.astype(jnp.bfloat16))
                          + sub_b.astype(jnp.bfloat16)).astype(jnp.bfloat16)
    out_bf16 = sublayer_connection(xb, sub_bf16, ln_w, ln_b, seed=0)
    jax.block_until_ready(out_bf16)
    assert out_bf16.shape == (batch, seq, hidden)
    assert out_bf16.dtype == jnp.bfloat16
    assert bool(jnp.all(jnp.isfinite(out_bf16.astype(jnp.float32))))

    print("KERNEL_OK")
</pallas_src>

<mosaic_0001>
module attributes {stable_mosaic.version = 11 : i64} {
  func.func @_sublayer_kernel(%arg0: i32, %arg1: memref<1xi32, #tpu.memory_space<smem>>, %arg2: memref<8x32xf32, #tpu.memory_space<vmem>>, %arg3: memref<8x32xf32, #tpu.memory_space<vmem>>, %arg4: memref<1x32xf32, #tpu.memory_space<vmem>>, %arg5: memref<1x32xf32, #tpu.memory_space<vmem>>, %arg6: memref<8x32xf32, #tpu.memory_space<vmem>>) attributes {dimension_semantics = [#tpu.dimension_semantics<parallel>], iteration_bounds = array<i64: 2>, scalar_prefetch = 1 : i64, scratch_operands = 0 : i64, tpu.core_type = #tpu.core_type<tc>, window_params = [{transform_indices = @transform_0, window_bounds = array<i64: 8, 32>}, {transform_indices = @transform_1, window_bounds = array<i64: 8, 32>}, {pipeline_mode = #tpu.pipeline_mode<synchronous>, transform_indices = @transform_2, window_bounds = array<i64: 1, 32>}, {pipeline_mode = #tpu.pipeline_mode<synchronous>, transform_indices = @transform_3, window_bounds = array<i64: 1, 32>}, {transform_indices = @transform_4, window_bounds = array<i64: 8, 32>}]} {
    %c8_i32 = arith.constant 8 : i32
    %0 = arith.muli %arg0, %c8_i32 : i32
    %c0 = arith.constant 0 : index
    %c0_0 = arith.constant 0 : index
    %1 = vector.load %arg2[%c0, %c0_0] : memref<8x32xf32, #tpu.memory_space<vmem>>, vector<8x32xf32>
    %c0_1 = arith.constant 0 : index
    %c0_2 = arith.constant 0 : index
    %2 = vector.load %arg3[%c0_1, %c0_2] : memref<8x32xf32, #tpu.memory_space<vmem>>, vector<8x32xf32>
    %c0_3 = arith.constant 0 : index
    %c0_4 = arith.constant 0 : index
    %3 = vector.load %arg4[%c0_3, %c0_4] : memref<1x32xf32, #tpu.memory_space<vmem>>, vector<1x32xf32>
    %c0_5 = arith.constant 0 : index
    %c0_6 = arith.constant 0 : index
    %4 = vector.load %arg5[%c0_5, %c0_6] : memref<1x32xf32, #tpu.memory_space<vmem>>, vector<1x32xf32>
    %c0_7 = arith.constant 0 : index
    %5 = memref.load %arg1[%c0_7] : memref<1xi32, #tpu.memory_space<smem>>
    %6 = tpu.iota {dimensions = array<i32: 0>} : vector<8x1xi32>
    %7 = vector.broadcast %0 : i32 to vector<8x1xi32>
    %8 = arith.addi %6, %7 : vector<8x1xi32>
    %9 = tpu.iota {dimensions = array<i32: 1>} : vector<1x32xi32>
    %10 = vector.broadcast %5 : i32 to vector<8x1xi32>
    %11 = arith.xori %8, %10 : vector<8x1xi32>
    %c2147483647_i32 = arith.constant 2147483647 : i32
    %12 = vector.broadcast %c2147483647_i32 : i32 to vector<8x1xi32>
    %13 = arith.andi %11, %12 : vector<8x1xi32>
    %c15_i32 = arith.constant 15 : i32
    %14 = vector.broadcast %c15_i32 : i32 to vector<8x1xi32>
    %15 = arith.shrsi %13, %14 : vector<8x1xi32>
    %16 = arith.xori %15, %13 : vector<8x1xi32>
    %c73244475_i32 = arith.constant 73244475 : i32
    %17 = vector.broadcast %c73244475_i32 : i32 to vector<8x1xi32>
    %18 = arith.muli %16, %17 : vector<8x1xi32>
    %c2147483647_i32_8 = arith.constant 2147483647 : i32
    %19 = vector.broadcast %c2147483647_i32_8 : i32 to vector<8x1xi32>
    %20 = arith.andi %18, %19 : vector<8x1xi32>
    %c13_i32 = arith.constant 13 : i32
    %21 = vector.broadcast %c13_i32 : i32 to vector<8x1xi32>
    %22 = arith.shrsi %20, %21 : vector<8x1xi32>
    %23 = arith.xori %22, %20 : vector<8x1xi32>
    %c1540483477_i32 = arith.constant 1540483477 : i32
    %24 = vector.broadcast %c1540483477_i32 : i32 to vector<8x1xi32>
    %25 = arith.muli %23, %24 : vector<8x1xi32>
    %c2147483647_i32_9 = arith.constant 2147483647 : i32
    %26 = vector.broadcast %c2147483647_i32_9 : i32 to vector<8x1xi32>
    %27 = arith.andi %25, %26 : vector<8x1xi32>
    %c668265263_i32 = arith.constant 668265263 : i32
    %28 = vector.broadcast %c668265263_i32 : i32 to vector<1x32xi32>
    %29 = arith.muli %9, %28 : vector<1x32xi32>
    %c2147483647_i32_10 = arith.constant 2147483647 : i32
    %30 = vector.broadcast %c2147483647_i32_10 : i32 to vector<1x32xi32>
    %31 = arith.andi %29, %30 : vector<1x32xi32>
    %c15_i32_11 = arith.constant 15 : i32
    %32 = vector.broadcast %c15_i32_11 : i32 to vector<1x32xi32>
    %33 = arith.shrsi %31, %32 : vector<1x32xi32>
    %34 = arith.xori %33, %31 : vector<1x32xi32>
    %c73244475_i32_12 = arith.constant 73244475 : i32
    %35 = vector.broadcast %c73244475_i32_12 : i32 to vector<1x32xi32>
    %36 = arith.muli %34, %35 : vector<1x32xi32>
    %c2147483647_i32_13 = arith.constant 2147483647 : i32
    %37 = vector.broadcast %c2147483647_i32_13 : i32 to vector<1x32xi32>
    %38 = arith.andi %36, %37 : vector<1x32xi32>
    %c13_i32_14 = arith.constant 13 : i32
    %39 = vector.broadcast %c13_i32_14 : i32 to vector<1x32xi32>
    %40 = arith.shrsi %38, %39 : vector<1x32xi32>
    %41 = arith.xori %40, %38 : vector<1x32xi32>
    %42 = vector.broadcast %27 : vector<8x1xi32> to vector<8x32xi32>
    %43 = vector.broadcast %41 : vector<1x32xi32> to vector<8x32xi32>
    %44 = arith.addi %42, %43 : vector<8x32xi32>
    %c2147483647_i32_15 = arith.constant 2147483647 : i32
    %45 = vector.broadcast %c2147483647_i32_15 : i32 to vector<8x32xi32>
    %46 = arith.andi %44, %45 : vector<8x32xi32>
    %c16_i32 = arith.constant 16 : i32
    %47 = vector.broadcast %c16_i32 : i32 to vector<8x32xi32>
    %48 = arith.shrsi %46, %47 : vector<8x32xi32>
    %49 = arith.xori %48, %46 : vector<8x32xi32>
    %c73244475_i32_16 = arith.constant 73244475 : i32
    %50 = vector.broadcast %c73244475_i32_16 : i32 to vector<8x32xi32>
    %51 = arith.muli %49, %50 : vector<8x32xi32>
    %c2147483647_i32_17 = arith.constant 2147483647 : i32
    %52 = vector.broadcast %c2147483647_i32_17 : i32 to vector<8x32xi32>
    %53 = arith.andi %51, %52 : vector<8x32xi32>
    %c16_i32_18 = arith.constant 16 : i32
    %54 = vector.broadcast %c16_i32_18 : i32 to vector<8x32xi32>
    %55 = arith.shrsi %53, %54 : vector<8x32xi32>
    %56 = arith.xori %55, %53 : vector<8x32xi32>
    %c214748365_i32 = arith.constant 214748365 : i32
    %57 = vector.broadcast %c214748365_i32 : i32 to vector<8x32xi32>
    %58 = arith.cmpi sge, %56, %57 : vector<8x32xi32>
    %cst = arith.constant 1.11111116 : f32
    %59 = vector.broadcast %cst : f32 to vector<8x32xf32>
    %60 = arith.mulf %2, %59 : vector<8x32xf32>
    %cst_19 = arith.constant 0.000000e+00 : f32
    %61 = vector.broadcast %cst_19 : f32 to vector<8x32xf32>
    %62 = arith.select %58, %60, %61 : vector<8x32xi1>, vector<8x32xf32>
    %63 = arith.addf %1, %62 : vector<8x32xf32>
    %cst_20 = arith.constant dense<0.000000e+00> : vector<8xf32>
    %64 = vector.multi_reduction <add>, %63, %cst_20 [1] : vector<8x32xf32> to vector<8xf32>
    %65 = vector.shape_cast %64 : vector<8xf32> to vector<8x1xf32>
    %cst_21 = arith.constant 3.200000e+01 : f32
    %66 = vector.broadcast %cst_21 : f32 to vector<8x1xf32>
    %67 = arith.divf %65, %66 : vector<8x1xf32>
    %68 = vector.broadcast %67 : vector<8x1xf32> to vector<8x32xf32>
    %69 = arith.subf %63, %68 : vector<8x32xf32>
    %70 = arith.mulf %69, %69 : vector<8x32xf32>
    %cst_22 = arith.constant dense<0.000000e+00> : vector<8xf32>
    %71 = vector.multi_reduction <add>, %70, %cst_22 [1] : vector<8x32xf32> to vector<8xf32>
    %72 = vector.shape_cast %71 : vector<8xf32> to vector<8x1xf32>
    %cst_23 = arith.constant 0.0322580636 : f32
    %73 = vector.broadcast %cst_23 : f32 to vector<8x1xf32>
    %74 = arith.mulf %72, %73 : vector<8x1xf32>
    %75 = math.sqrt %74 : vector<8x1xf32>
    %cst_24 = arith.constant 9.99999997E-7 : f32
    %76 = vector.broadcast %cst_24 : f32 to vector<8x1xf32>
    %77 = arith.addf %75, %76 : vector<8x1xf32>
    %cst_25 = arith.constant 1.000000e+00 : f32
    %78 = vector.broadcast %cst_25 : f32 to vector<8x1xf32>
    %79 = arith.divf %78, %77 : vector<8x1xf32>
    %80 = vector.broadcast %79 : vector<8x1xf32> to vector<8x32xf32>
    %81 = arith.mulf %69, %80 : vector<8x32xf32>
    %82 = vector.broadcast %3 : vector<1x32xf32> to vector<8x32xf32>
    %83 = arith.mulf %82, %81 : vector<8x32xf32>
    %84 = vector.broadcast %4 : vector<1x32xf32> to vector<8x32xf32>
    %85 = arith.addf %83, %84 : vector<8x32xf32>
    %c0_26 = arith.constant 0 : index
    %c0_27 = arith.constant 0 : index
    %86 = vector.load %arg6[%c0_26, %c0_27] : memref<8x32xf32, #tpu.memory_space<vmem>>, vector<8x32xf32>
    tpu.vector_store %arg6[%c0_26, %c0_27], %85 {strides = array<i32>} : memref<8x32xf32, #tpu.memory_space<vmem>>, vector<8x32xf32>,
    return
  }
  func.func @transform_0(%arg0: i32, %arg1: memref<1xi32, #tpu.memory_space<smem>>) -> (i32, i32) {
    %c0_i32 = arith.constant 0 : i32
    %c0_i32_0 = arith.constant 0 : i32
    return %arg0, %c0_i32 : i32, i32
  }
  func.func @transform_1(%arg0: i32, %arg1: memref<1xi32, #tpu.memory_space<smem>>) -> (i32, i32) {
    %c0_i32 = arith.constant 0 : i32
    %c0_i32_0 = arith.constant 0 : i32
    return %arg0, %c0_i32 : i32, i32
  }
  func.func @transform_2(%arg0: i32, %arg1: memref<1xi32, #tpu.memory_space<smem>>) -> (i32, i32) {
    %c0_i32 = arith.constant 0 : i32
    %c0_i32_0 = arith.constant 0 : i32
    %c0_i32_1 = arith.constant 0 : i32
    return %c0_i32, %c0_i32_0 : i32, i32
  }
  func.func @transform_3(%arg0: i32, %arg1: memref<1xi32, #tpu.memory_space<smem>>) -> (i32, i32) {
    %c0_i32 = arith.constant 0 : i32
    %c0_i32_0 = arith.constant 0 : i32
    %c0_i32_1 = arith.constant 0 : i32
    return %c0_i32, %c0_i32_0 : i32, i32
  }
  func.func @transform_4(%arg0: i32, %arg1: memref<1xi32, #tpu.memory_space<smem>>) -> (i32, i32) {
    %c0_i32 = arith.constant 0 : i32
    %c0_i32_0 = arith.constant 0 : i32
    return %arg0, %c0_i32 : i32, i32
  }
}

</mosaic_0001>

<llo_original>
// kernel: _sublayer_conn_pallas.1
$region0: #{_sublayer_conn_pallas.1}
  #allocation0 [shape = 'u32[]', space=smem, size = 0x4, offset = 0x4, fixed_abs, tag = 'smem constant byte address 0x4 - core index']
  #allocation1 [shape = 'u32[144,128]{1,0:T(1,128)}', space=vmem, size = 0x12000, scoped, tag = 'internal scratch']
  #allocation2 [shape = 's32[1]{0}', space=sflag, size = 0x4, scoped, tag = 'scoped memory for _sublayer_conn_pallas.1']
  #allocation3 [shape = 's32[1]{0:T(128)S(6)}', space=smem, size = 0x200, scoped, tag = 'prefetched SMEM operand 0']
  %s0 = inlined_call_operand.<no memory space> [shape: s32[1], index: 0, kind: input, shape index: {}]
  %s1 = inlined_call_operand.hbm [shape: f32[16,32], index: 1, kind: input, shape index: {}]
  %s2 = inlined_call_operand.hbm [shape: f32[16,32], index: 2, kind: input, shape index: {}]
  %s3 = inlined_call_operand.vmem [shape: f32[1,32], index: 3, kind: input, shape index: {}]
  %s4 = inlined_call_operand.vmem [shape: f32[1,32], index: 4, kind: input, shape index: {}]
  %s5 = inlined_call_operand.hbm [shape: f32[16,32], index: 5, kind: output, shape index: {}]
  %s6 = sld [smem:[#allocation0]]
  $region57: #{_sublayer_conn_pallas.1} parent=0
    _
  %s8 = ssub.s32 1, %s6
  %s9 = scalar_select 0, %s8, %s6
  %10 = sst [smem:[#allocation3]] %s0
  $region1: #{_sublayer_conn_pallas.1} parent=0
    #allocation4 [shape = 'u8[8192]{0}', space=vmem, size = 0x2000, scoped, tag = 'input window, operand 1']
    #allocation5 [shape = 's32[2]{0}', space=sflag, size = 0x8, scoped, tag = 'scoped memory for _sublayer_conn_pallas.1']
    #allocation6 [shape = 's32[2]{0}', space=sflag, size = 0x8, scoped, tag = 'scoped memory for _sublayer_conn_pallas.1']
    #allocation7 [shape = 'u8[8192]{0}', space=vmem, size = 0x2000, scoped, tag = 'input window, operand 2']
    #allocation8 [shape = 's32[2]{0}', space=sflag, size = 0x8, scoped, tag = 'scoped memory for _sublayer_conn_pallas.1']
    #allocation9 [shape = 'u8[8192]{0}', space=vmem, size = 0x2000, scoped, tag = 'output window, operand 0']
    %11 = vsyncpa [#allocation5], 0
    %s12 = scalar_lea.sflag [#allocation5], 1
    %13 = vsyncpa %s12, 0
    %14 = vsyncpa [#allocation8], 0
    %s15 = scalar_lea.sflag [#allocation8], 1
    %16 = vsyncpa %s15, 0
    %17 = vsyncpa [#allocation6], 0
    %s18 = scalar_lea.sflag [#allocation6], 1
    %19 = vsyncpa %s18, 0
    loop: start=0, step=1, limit=4
    $region2: #{_sublayer_conn_pallas.1} parent=1 // loop_pre_header
      _
    $region3: #{_sublayer_conn_pallas.1} parent=1 // loop_header
      %s21 = sphi 0, %s25
      %p22 = scmp.ge.s32.totalorder %s21, 4
      %s31 = sphi 0, %s33
      %s34 = sphi 0, %s31
      %s35 = sphi 0, %s34
      %s51 = sphi 0, %s35
      %s57 = sphi 0, %s59
      %s60 = sphi 0, %s57
      %s61 = sphi 0, %s60
      %s77 = sphi 0, %s61
      %s81 = sphi 0, %s81
      %s83 = sphi 0, %s81
      %s84 = sphi 0, %s83
      %s98 = sphi 0, %s84
      %s102 = sphi 0, %s102
      %s104 = sphi 0, %s102
      %s105 = sphi 0, %s104
      %s119 = sphi 0, %s105
      %s125 = sphi 0, %s127
      %s128 = sphi 0, %s125
      %s129 = sphi 0, %s128
      %s145 = sphi 0, %s129
    $region4: #{_sublayer_conn_pallas.1} parent=1 // loop_header_branch
      %24 = sbr.rel (%p22) target = $region8
    $region5: #{_sublayer_conn_pallas.1} parent=1 // loop_body
      %s26 = ssub.s32 %s21, 1
      %s27 = ssub.s32 %s21, 2
      %s28 = sadd.s32 %s21, 1
      %s29 = ssub.s32 %s21, %s28
      %p30 = scmp.eq.s32.totalorder %s29, 0
      %s32 = sadd.s32 %s31, 1
      %s33 = scalar_select %p30, %s31, %s32
      %p36 = pneg %p30
      %p37 = scmp.eq.s32.totalorder %s21, 1
      %p38 = por %p36, %p37
      %p39 = scmp.ne.s32.totalorder %s31, %s34
      %p40 = scmp.eq.s32.totalorder %s21, 0
      %p41 = por %p39, %p40
      %p42 = scmp.ne.s32.totalorder %s31, %s34
      %p43 = scmp.eq.s32.totalorder %s26, 1
      %p44 = por %p42, %p43
      %p45 = scmp.ne.s32.totalorder %s34, %s35
      %p46 = scmp.eq.s32.totalorder %s26, 0
      %p47 = por %p45, %p46
      %p48 = scmp.ne.s32.totalorder %s34, %s35
      %p49 = scmp.eq.s32.totalorder %s27, 1
      %p50 = por %p48, %p49
      %p52 = scmp.ne.s32.totalorder %s35, %s51
      %p53 = scmp.eq.s32.totalorder %s27, 0
      %p54 = por %p52, %p53
      %s55 = ssub.s32 %s21, %s28
      %p56 = scmp.eq.s32.totalorder %s55, 0
      %s58 = sadd.s32 %s57, 1
      %s59 = scalar_select %p56, %s57, %s58
      %p62 = pneg %p56
      %p63 = scmp.eq.s32.totalorder %s21, 1
      %p64 = por %p62, %p63
      %p65 = scmp.ne.s32.totalorder %s57, %s60
      %p66 = scmp.eq.s32.totalorder %s21, 0
      %p67 = por %p65, %p66
      %p68 = scmp.ne.s32.totalorder %s57, %s60
      %p69 = scmp.eq.s32.totalorder %s26, 1
      %p70 = por %p68, %p69
      %p71 = scmp.ne.s32.totalorder %s60, %s61
      %p72 = scmp.eq.s32.totalorder %s26, 0
      %p73 = por %p71, %p72
      %p74 = scmp.ne.s32.totalorder %s60, %s61
      %p75 = scmp.eq.s32.totalorder %s27, 1
      %p76 = por %p74, %p75
      %p78 = scmp.ne.s32.totalorder %s61, %s77
      %p79 = scmp.eq.s32.totalorder %s27, 0
      %p80 = por %p78, %p79
      %s82 = sadd.s32 %s81, 1
      %p85 = scmp.eq.s32.totalorder %s21, 1
      %p86 = scmp.ne.s32.totalorder %s81, %s83
      %p87 = scmp.eq.s32.totalorder %s21, 0
      %p88 = por %p86, %p87
      %p89 = scmp.ne.s32.totalorder %s81, %s83
      %p90 = scmp.eq.s32.totalorder %s26, 1
      %p91 = por %p89, %p90
      %p92 = scmp.ne.s32.totalorder %s83, %s84
      %p93 = scmp.eq.s32.totalorder %s26, 0
      %p94 = por %p92, %p93
      %p95 = scmp.ne.s32.totalorder %s83, %s84
      %p96 = scmp.eq.s32.totalorder %s27, 1
      %p97 = por %p95, %p96
      %p99 = scmp.ne.s32.totalorder %s84, %s98
      %p100 = scmp.eq.s32.totalorder %s27, 0
      %p101 = por %p99, %p100
      %s103 = sadd.s32 %s102, 1
      %p106 = scmp.eq.s32.totalorder %s21, 1
      %p107 = scmp.ne.s32.totalorder %s102, %s104
      %p108 = scmp.eq.s32.totalorder %s21, 0
      %p109 = por %p107, %p108
      %p110 = scmp.ne.s32.totalorder %s102, %s104
      %p111 = scmp.eq.s32.totalorder %s26, 1
      %p112 = por %p110, %p111
      %p113 = scmp.ne.s32.totalorder %s104, %s105
      %p114 = scmp.eq.s32.totalorder %s26, 0
      %p115 = por %p113, %p114
      %p116 = scmp.ne.s32.totalorder %s104, %s105
      %p117 = scmp.eq.s32.totalorder %s27, 1
      %p118 = por %p116, %p117
      %p120 = scmp.ne.s32.totalorder %s105, %s119
      %p121 = scmp.eq.s32.totalorder %s27, 0
      %p122 = por %p120, %p121
      %s123 = ssub.s32 %s21, %s28
      %p124 = scmp.eq.s32.totalorder %s123, 0
      %s126 = sadd.s32 %s125, 1
      %s127 = scalar_select %p124, %s125, %s126
      %p130 = pneg %p124
      %p131 = scmp.eq.s32.totalorder %s21, 1
      %p132 = por %p130, %p131
      %p133 = scmp.ne.s32.totalorder %s125, %s128
      %p134 = scmp.eq.s32.totalorder %s21, 0
      %p135 = por %p133, %p134
      %p136 = scmp.ne.s32.totalorder %s125, %s128
      %p137 = scmp.eq.s32.totalorder %s26, 1
      %p138 = por %p136, %p137
      %p139 = scmp.ne.s32.totalorder %s128, %s129
      %p140 = scmp.eq.s32.totalorder %s26, 0
      %p141 = por %p139, %p140
      %p142 = scmp.ne.s32.totalorder %s128, %s129
      %p143 = scmp.eq.s32.totalorder %s27, 1
      %p144 = por %p142, %p143
      %p146 = scmp.ne.s32.totalorder %s129, %s145
      %p147 = scmp.eq.s32.totalorder %s27, 0
      %p148 = por %p146, %p147
      %p149 = scmp.le.s32.totalorder 1, %s21
      %p150 = scmp.lt.s32.totalorder %s21, 3
      %p151 = pnand %p149, %p150
      %p152 = pneg %p151
      // Predicated region
      $region9: #{_sublayer_conn_pallas.1} parent=5 // pred_check
        _
      $region10: #{_sublayer_conn_pallas.1} parent=5 // pred_check_branch
        %154 = sbr.rel (%p151) target = $region12
      $region11: #{_sublayer_conn_pallas.1} parent=5 // pred_region
        %s155 = ssub.s32 %s21, 1
        // Predicated region
        $region13: #{_sublayer_conn_pallas.1} parent=11 // pred_check
          %p156 = pneg %p94
        $region14: #{_sublayer_conn_pallas.1} parent=11 // pred_check_branch
          %158 = sbr.rel (%p156) target = $region16
        $region15: #{_sublayer_conn_pallas.1} parent=11 // pred_region
          _
        $region16: #{_sublayer_conn_pallas.1} parent=11 // pred_fallthru
          _
        // Predicated region
        $region17: #{_sublayer_conn_pallas.1} parent=11 // pred_check
          %p159 = pneg %p115
        $region18: #{_sublayer_conn_pallas.1} parent=11 // pred_check_branch
          %161 = sbr.rel (%p159) target = $region20
        $region19: #{_sublayer_conn_pallas.1} parent=11 // pred_region
          _
        $region20: #{_sublayer_conn_pallas.1} parent=11 // pred_fallthru
          _
      $region12: #{_sublayer_conn_pallas.1} parent=5 // pred_fallthru
        _
      %p162 = scmp.lt.s32.totalorder %s21, 2
      // Predicated region
      $region21: #{_sublayer_conn_pallas.1} parent=5 // pred_check
        %p163 = pneg %p162
      $region22: #{_sublayer_conn_pallas.1} parent=5 // pred_check_branch
        %165 = sbr.rel (%p163) target = $region24
      $region23: #{_sublayer_conn_pallas.1} parent=5 // pred_region
        // Predicated region
        $region25: #{_sublayer_conn_pallas.1} parent=23 // pred_check
          %p166 = pneg %p41
        $region26: #{_sublayer_conn_pallas.1} parent=23 // pred_check_branch
          %168 = sbr.rel (%p166) target = $region28
        $region27: #{_sublayer_conn_pallas.1} parent=23 // pred_region
          %s169 = sand.u32 %s31, 1
          %s170 = scalar_lea.sflag [#allocation5], %s169
          %s171 = sand.u32 %s31, 1
          %s172 = smul.addr %s171, 8
          %s173 = scalar_lea.vmem [#allocation4], %s172
          %s175 = ssub.s32 128, 128
          %176 = vsyncadd %s170, %s175
          %s177 = smul.addr %s21, 128
          %s178 = scalar_lea.hbm %s1, %s177
          %s180 = sshll.u32 %s173, 4
          %s181 = int_to_ptr.vmem [resolvable:$true] %s180
          %183 = dma.hbm_to_vmem [thread:$0]  %s178, 128, %s181, %s170
        $region28: #{_sublayer_conn_pallas.1} parent=23 // pred_fallthru
          _
        // Predicated region
        $region29: #{_sublayer_conn_pallas.1} parent=23 // pred_check
          %p184 = pneg %p67
        $region30: #{_sublayer_conn_pallas.1} parent=23 // pred_check_branch
          %186 = sbr.rel (%p184) target = $region32
        $region31: #{_sublayer_conn_pallas.1} parent=23 // pred_region
          %s187 = sand.u32 %s57, 1
          %s188 = scalar_lea.sflag [#allocation8], %s187
          %s189 = sand.u32 %s57, 1
          %s190 = smul.addr %s189, 8
          %s191 = scalar_lea.vmem [#allocation7], %s190
          %s193 = ssub.s32 128, 128
          %194 = vsyncadd %s188, %s193
          %s195 = smul.addr %s21, 128
          %s196 = scalar_lea.hbm %s2, %s195
          %s198 = sshll.u32 %s191, 4
          %s199 = int_to_ptr.vmem [resolvable:$true] %s198
          %201 = dma.hbm_to_vmem [thread:$0]  %s196, 128, %s199, %s188
        $region32: #{_sublayer_conn_pallas.1} parent=23 // pred_fallthru
          _
      $region24: #{_sublayer_conn_pallas.1} parent=5 // pred_fallthru
        _
      %p202 = scmp.le.s32.totalorder 1, %s21
      %p203 = scmp.lt.s32.totalorder %s21, 3
      %p204 = pnand %p202, %p203
      %p205 = pneg %p204
      // Predicated region
      $region33: #{_sublayer_conn_pallas.1} parent=5 // pred_check
        _
      $region34: #{_sublayer_conn_pallas.1} parent=5 // pred_check_branch
        %207 = sbr.rel (%p204) target = $region36
      $region35: #{_sublayer_conn_pallas.1} parent=5 // pred_region
        %s208 = ssub.s32 %s21, 1
        %s209 = sand.u32 %s34, 1
        %s210 = scalar_lea.sflag [#allocation5], %s209
        %s211 = sand.u32 %s34, 1
        %s212 = smul.addr %s211, 8
        %s213 = scalar_lea.vmem [#allocation4], %s212
        // Predicated region
        $region37: #{_sublayer_conn_pallas.1} parent=35 // pred_check
          %p214 = pneg %p47
        $region38: #{_sublayer_conn_pallas.1} parent=35 // pred_check_branch
          %216 = sbr.rel (%p214) target = $region40
        $region39: #{_sublayer_conn_pallas.1} parent=35 // pred_region
          %217 = dma.done %s210, 128
        $region40: #{_sublayer_conn_pallas.1} parent=35 // pred_fallthru
          _
        %s218 = sand.u32 %s60, 1
        %s219 = scalar_lea.sflag [#allocation8], %s218
        %s220 = sand.u32 %s60, 1
        %s221 = smul.addr %s220, 8
        %s222 = scalar_lea.vmem [#allocation7], %s221
        // Predicated region
        $region41: #{_sublayer_conn_pallas.1} parent=35 // pred_check
          %p223 = pneg %p73
        $region42: #{_sublayer_conn_pallas.1} parent=35 // pred_check_branch
          %225 = sbr.rel (%p223) target = $region44
        $region43: #{_sublayer_conn_pallas.1} parent=35 // pred_region
          %226 = dma.done %s219, 128
        $region44: #{_sublayer_conn_pallas.1} parent=35 // pred_fallthru
          _
        %s227 = sand.u32 %s34, 1
        %s228 = scalar_lea.sflag [#allocation5], %s227
        %s229 = sand.u32 %s34, 1
        %s230 = smul.addr %s229, 8
        %s231 = scalar_lea.vmem [#allocation4], %s230
        %p232 = pneg %p47
        %p233 = pneg %p44
        %s234 = sand.u32 %s60, 1
        %s235 = scalar_lea.sflag [#allocation8], %s234
        %s236 = sand.u32 %s60, 1
        %s237 = smul.addr %s236, 8
        %s238 = scalar_lea.vmem [#allocation7], %s237
        %p239 = pneg %p73
        %p240 = pneg %p70
        %p241 = pneg %p94
        %p242 = pneg %p91
        %p243 = pneg %p115
        %p244 = pneg %p112
        %p245 = pneg %p141
        %p246 = pneg %p138
        %s247 = sand.u32 %s128, 1
        %s248 = scalar_lea.sflag [#allocation6], %s247
        %s249 = sand.u32 %s128, 1
        %s250 = smul.addr %s249, 8
        %s251 = scalar_lea.vmem [#allocation9], %s250
        %s252 = smul.u32 %s26, 8
        %v253 = vld [vmem:[%s213] sm:$0xff]
        %v254 = vld [vmem:[%s222] sm:$0xff]
        %v255 = vld [vmem:[%s3] sm:$0x1]
        %v256 = vld [vmem:[%s4] sm:$0x1]
        %s257 = sld [smem:[#allocation3]]
        %v258 = vlaneseq
        %v259 = vshrl.u32 %v258, 7
        %v260 = vstv %s252
        %v261 = vadd.s32 %v259, %v260
        %v262 = vlaneseq
        %v263 = vand.u32 %v262, 127
        %v264 = vstv %s257
        %v265 = vxor.u32 %v261, %v264
        %v266 = vand.u32 %v265, 2147483647
        %v267 = vshra.s32 %v266, 15
        %v268 = vxor.u32 %v267, %v266
        %v269 = vmul.u32 %v268, 73244475
        %v270 = vand.u32 %v269, 2147483647
        %v271 = vshra.s32 %v270, 13
        %v272 = vxor.u32 %v271, %v270
        %v273 = vmul.u32 %v272, 1540483477
        %v274 = vand.u32 %v273, 2147483647
        %v275 = vmul.u32 %v263, 668265263
        %v276 = vand.u32 %v275, 2147483647
        %v277 = vshra.s32 %v276, 15
        %v278 = vxor.u32 %v277, %v276
        %v279 = vmul.u32 %v278, 73244475
        %v280 = vand.u32 %v279, 2147483647
        %v281 = vshra.s32 %v280, 13
        %v282 = vxor.u32 %v281, %v280
        %v283 = vadd.s32 %v274, %v282
        %v284 = vand.u32 %v283, 2147483647
        %v285 = vshra.s32 %v284, 16
        %v286 = vxor.u32 %v285, %v284
        %v287 = vmul.u32 %v286, 73244475
        %v288 = vand.u32 %v287, 2147483647
        %v289 = vshra.s32 %v288, 16
        %v290 = vxor.u32 %v289, %v288
        %vm291 = vcmp.ge.s32.totalorder %v290, 214748365
        %v292 = vmul.f32 %v254, 1.1111112
        %v293 = vsel %vm291, %v292, 0.0
        %v294 = vadd.f32 %v253, %v293
        %vm295 = vcmask 261120
        %v296 = vsel %vm295, %v294, 0.0
        %297 = vadd.xlane.f32.xlu0 %v296
        %v298 = vpop.xlane.xlu0 %297
        %v299 = vrcp.pop 32.0
        %v300 = vmul.f32 %v298, %v299
        %v301 = vsub.f32 %v294, %v300
        %v302 = vmul.f32 %v301, %v301
        %v303 = vsel %vm295, %v302, 0.0
        %304 = vadd.xlane.f32.xlu0 %v303
        %v305 = vpop.xlane.xlu0 %304
        %v306 = vmul.f32 %v305, 0.032258064
        %v307 = vrsqrt.pop %v306
        %v308 = vmul.f32 %v306, %v307
        %vm309 = vcmp.eq.f32.partialorder %v306, inf
        %v310 = vsel %vm309, %v306, %v308
        %vm311 = vcmp.eq.f32.partialorder %v306, 0.0
        %v312 = vand.u32 %v306, 2147483648
        %v313 = vsel %vm311, %v312, %v310
        %v314 = vadd.f32 %v313, 1e-06
        %v315 = vrcp.pop %v314
        %v316 = vmul.f32 1.0, %v315
        %v317 = vmul.f32 %v301, %v316
        %v319 = vlaneseq
        %v320 = vshrl.u32 %v319, 7
        %v321 = vsub.s32 0, %v320
        %v322 = vrot.slane %v255, %v321
        %v324 = vmul.f32 %v322, %v317
        %v326 = vlaneseq
        %v327 = vshrl.u32 %v326, 7
        %v328 = vsub.s32 0, %v327
        %v329 = vrot.slane %v256, %v328
        %v331 = vadd.f32 %v324, %v329
        %332 = vst.msk [vmem:[%s251] sm:$0xff] %vm295, %v331
        %s333 = sand.u32 %s128, 1
        %s334 = scalar_lea.sflag [#allocation6], %s333
        %s335 = sand.u32 %s128, 1
        %s336 = smul.addr %s335, 8
        %s337 = scalar_lea.vmem [#allocation9], %s336
        // Predicated region
        $region45: #{_sublayer_conn_pallas.1} parent=35 // pred_check
          %p338 = pneg %p138
        $region46: #{_sublayer_conn_pallas.1} parent=35 // pred_check_branch
          %340 = sbr.rel (%p338) target = $region48
        $region47: #{_sublayer_conn_pallas.1} parent=35 // pred_region
          %s342 = ssub.s32 128, 128
          %343 = vsyncadd %s334, %s342
          %s344 = smul.addr %s26, 128
          %s345 = scalar_lea.hbm %s5, %s344
          %s347 = sshll.u32 %s337, 4
          %s348 = int_to_ptr.vmem [resolvable:$true] %s347
          %350 = dma.vmem_to_hbm [thread:$0]  %s348, 128, %s345, %s334
        $region48: #{_sublayer_conn_pallas.1} parent=35 // pred_fallthru
          _
      $region36: #{_sublayer_conn_pallas.1} parent=5 // pred_fallthru
        _
      %p351 = scmp.le.s32.totalorder 2, %s21
      // Predicated region
      $region49: #{_sublayer_conn_pallas.1} parent=5 // pred_check
        %p352 = pneg %p351
      $region50: #{_sublayer_conn_pallas.1} parent=5 // pred_check_branch
        %354 = sbr.rel (%p352) target = $region52
      $region51: #{_sublayer_conn_pallas.1} parent=5 // pred_region
        %s355 = ssub.s32 %s21, 2
        // Predicated region
        $region53: #{_sublayer_conn_pallas.1} parent=51 // pred_check
          %p356 = pneg %p144
        $region54: #{_sublayer_conn_pallas.1} parent=51 // pred_check_branch
          %358 = sbr.rel (%p356) target = $region56
        $region55: #{_sublayer_conn_pallas.1} parent=51 // pred_region
          %s359 = sand.u32 %s129, 1
          %s360 = scalar_lea.sflag [#allocation6], %s359
          %s361 = sand.u32 %s129, 1
          %s362 = smul.addr %s361, 8
          %s363 = scalar_lea.vmem [#allocation9], %s362
          %364 = dma.done %s360, 128
        $region56: #{_sublayer_conn_pallas.1} parent=51 // pred_fallthru
          _
      $region52: #{_sublayer_conn_pallas.1} parent=5 // pred_fallthru
        _
    $region6: #{_sublayer_conn_pallas.1} parent=1 // loop_footer
      %s25 = sadd.s32 1, %s21
    $region7: #{_sublayer_conn_pallas.1} parent=1 // loop_footer_branch
      %20 = sbr.rel target = $region3
    $region8: #{_sublayer_conn_pallas.1} parent=1 // loop_exit
      _
    %365 = vsyncpa [#allocation5], 1
    %s366 = scalar_lea.sflag [#allocation5], 1
    %367 = vsyncpa %s366, 1
    %368 = vsyncpa [#allocation8], 1
    %s369 = scalar_lea.sflag [#allocation8], 1
    %370 = vsyncpa %s369, 1
    %371 = vsyncpa [#allocation6], 1
    %s372 = scalar_lea.sflag [#allocation6], 1
    %373 = vsyncpa %s372, 1

</llo_original>
